<compile_context>
chip_gen: v7x
topology: tpu7x:2x2x1
jax: 0.10.0
libtpu: 0.0.40
codegen_flags: <defaults>
</compile_context>

<pallas_src>
import jax
import jax.numpy as jnp
from jax import lax
from jax.experimental import pallas as pl
from jax.experimental.pallas import tpu as pltpu

_STREAM_VMEM_BUDGET = 16 * 1024 * 1024  # target for double-buffered q/out streams


def _round_up(x, m):
    return ((x + m - 1) // m) * m


def _device_kind():
    try:
        return jax.devices()[0].device_kind.lower()
    except Exception:
        return ""


def _mxu_lane_width():
    k = _device_kind()
    # v6e / v7x MXUs are 256x256; v4 / v5 generations are 128-wide.
    return 256 if ("v6" in k or "v7" in k) else 128


def _num_tensorcores():
    k = _device_kind()
    # v7x has 2 TensorCores per device; v4 / v5p megacore also shards
    # "parallel" grid axes across 2 cores.  Lite chips (v5e / v6e) have 1.
    if "v7" in k or "v4" in k or "v5p" in k:
        return 2
    return 1


def _fused_mlp_kernel(q_ref, w_ref, b_ref, o_ref):
    # q_ref: (TR, DIN)  w_ref: (DIN, DOUT)  b_ref: (1, DOUT) f32  o_ref: (TR, DOUT)
    q = q_ref[...].astype(w_ref.dtype)  # free VPU cast; kernel is DMA bound
    acc = jnp.dot(q, w_ref[...], preferred_element_type=jnp.float32)
    # Bias add + final cast stay in the f32 accumulator (VPU slot has slack).
    o_ref[...] = (acc + b_ref[...]).astype(o_ref.dtype)


def prepare_mlp_embedding_params(w1, b1, w2, b2, *, compute_dtype=None, lane_target=None):
    """One-time weight prep: fuse the two Linears and build the lane-density fold.

    w1: (hidden, d_model)  b1: (hidden,)   (PyTorch Linear layout: (out, in))
    w2: (d_out, hidden)    b2: (d_out,)
    compute_dtype: dtype of the streamed MXU operands (bf16 ~2x HBM win).
    """
    if compute_dtype is None:
        compute_dtype = w1.dtype
    if lane_target is None:
        lane_target = _mxu_lane_width()
    hidden, d_model = w1.shape
    d_out = w2.shape[0]

    f32 = jnp.float32
    # Wf[m, o] = sum_h W1[h, m] * W2[o, h]   (== W1^T @ W2^T without transposes)
    Wf = lax.dot_general(w1.astype(f32), w2.astype(f32), (((0,), (1,)), ((), ())),
                         precision=lax.Precision.HIGHEST, preferred_element_type=f32)
    bf = lax.dot_general(b1.astype(f32), w2.astype(f32), (((0,), (1,)), ((), ())),
                         precision=lax.Precision.HIGHEST, preferred_element_type=f32)
    bf = bf + b2.astype(f32)

    # Lane-density fold: pack `fold` consecutive rows into the lane axis so both
    # loads and stores are full-width vregs matching the MXU tile.
    fold = 1
    if d_out > 0 and d_model == d_out and lane_target % d_out == 0:
        fold = lane_target // d_out
    # TODO(synk): compress=True (d_model_embed != d_model) takes the fold=1 path
    #             (masked <128-lane stores); functionally fine, just slower stores.
    if fold > 1:
        W_bd = jnp.kron(jnp.eye(fold, dtype=f32), Wf)  # block-diagonal fused weight
        b_bd = jnp.tile(bf, fold)
    else:
        W_bd, b_bd = Wf, bf

    return {
        "W": W_bd.astype(compute_dtype),       # streamed MXU operand dtype
        "b": b_bd.reshape(1, -1).astype(f32),  # bias stays f32 (accumulator add)
        "fold": int(fold),
        "d_model": int(d_model),
        "d_out": int(d_out),
    }


def mlp_embedding_extractor_apply(q, params, *, tile_r=None, out_dtype=None):
    """q: (B, S, d_model).  Returns (M, None) with M: (B, S, d_out)."""
    B, S, d_model = q.shape
    assert d_model == params["d_model"]
    fold, d_out = params["fold"], params["d_out"]
    W_bd, b_bd = params["W"], params["b"]
    if out_dtype is None:
        out_dtype = q.dtype

    din_f, dout_f = d_model * fold, d_out * fold
    R = B * S
    # Pad only up to a multiple of `fold` (<= fold-1 rows, usually 0).  No pad
    # to a multiple of the row tile: the grid is ragged and Pallas masks the
    # last partial block (rows are independent, so garbage rows can't leak).
    R_pad = _round_up(R, fold)
    q2 = q.reshape(R, d_model)
    if R_pad != R:
        q2 = jnp.pad(q2, ((0, R_pad - R), (0, 0)))
    R_f = R_pad // fold
    q_f = q2.reshape(R_f, din_f)  # contiguous row-major fold (free reshape)

    q_item = jnp.dtype(q.dtype).itemsize
    o_item = jnp.dtype(out_dtype).itemsize
    row_bytes = din_f * q_item + dout_f * o_item
    if tile_r is None:
        # Largest row tile whose double-buffered in+out streams fit the budget.
        tile_r = max(512, min(8192, (_STREAM_VMEM_BUDGET // (2 * row_bytes)) // 8 * 8))
    # Multi-TensorCore chips: keep >= ~4 grid steps so the "parallel" row axis
    # actually shards across cores instead of leaving one idle.
    min_steps = 4 if _num_tensorcores() >= 2 else 1
    tr = min(int(tile_r), _round_up(max(-(-R_f // min_steps), 8), 8))
    tr = max(8, (tr // 8) * 8)

    grid = (pl.cdiv(R_f, tr),)
    w_bytes = W_bd.size * W_bd.dtype.itemsize
    b_bytes = b_bd.size * b_bd.dtype.itemsize
    # Double-buffered streams + double-buffered resident weight/bias + slack.
    needed = 2 * tr * row_bytes + 2 * (w_bytes + b_bytes) + (4 << 20)
    vmem_limit = int(min(max(needed, 32 << 20), 48 << 20))

    cost = pl.CostEstimate(
        flops=2 * R_f * din_f * dout_f,
        transcendentals=0,
        bytes_accessed=R_f * din_f * q_item + R_f * dout_f * o_item + w_bytes + b_bytes,
    )

    out = pl.pallas_call(
        _fused_mlp_kernel,
        out_shape=jax.ShapeDtypeStruct((R_f, dout_f), out_dtype),
        grid=grid,
        in_specs=[
            pl.BlockSpec((tr, din_f), lambda i: (i, 0)),       # streamed row tiles
            pl.BlockSpec((din_f, dout_f), lambda i: (0, 0)),   # resident fused weight
            pl.BlockSpec((1, dout_f), lambda i: (0, 0)),       # resident fused bias
            # NOTE: weight/bias could use pipeline_mode=pl.Buffered(1) to drop their
            # duplicate buffer; skipped — they are <= 512 KiB, far from the VMEM cap.
        ],
        out_specs=pl.BlockSpec((tr, dout_f), lambda i: (i, 0)),
        compiler_params=pltpu.CompilerParams(
            dimension_semantics=("parallel",),   # shard rows across TCs on v7x/megacore
            vmem_limit_bytes=vmem_limit,
        ),
        cost_estimate=cost,
    )(q_f, W_bd, b_bd)

    M = out.reshape(R_pad, d_out)
    if R_pad != R:
        M = M[:R]
    return (M.reshape(B, S, d_out), None)


def mlp_embedding_extractor_forward(q, w1, b1, w2, b2, *, compute_dtype=None,
                                    tile_r=None, out_dtype=None):
    """Convenience wrapper: prep + apply.  For repeated calls with static weights,
    call prepare_mlp_embedding_params once and reuse mlp_embedding_extractor_apply."""
    params = prepare_mlp_embedding_params(w1, b1, w2, b2, compute_dtype=compute_dtype)
    return mlp_embedding_extractor_apply(q, params, tile_r=tile_r, out_dtype=out_dtype)


def _reference_forward(q, w1, b1, w2, b2):
    h = jnp.einsum("bsd,hd->bsh", q, w1, precision=lax.Precision.HIGHEST) + b1
    return jnp.einsum("bsh,oh->bso", h, w2, precision=lax.Precision.HIGHEST) + b2


if __name__ == "__main__":
    # Module hyper-params (small, consistent with the forward):
    #   d_model = 32, n_head = 4, d_k = 8 -> hidden = 32; compress=False -> d_out = d_model
    B, S = 2, 8
    d_model, n_head, d_k = 32, 4, 8
    hidden = n_head * d_k
    d_out = d_model

    key = jax.random.PRNGKey(0)
    kq, kw1, kb1, kw2, kb2 = jax.random.split(key, 5)

    q = jax.random.normal(kq, (B, S, d_model), dtype=jnp.float32)
    w1 = jax.random.normal(kw1, (hidden, d_model), dtype=jnp.float32) * 0.1
    b1 = jax.random.normal(kb1, (hidden,), dtype=jnp.float32) * 0.1
    w2 = jax.random.normal(kw2, (d_out, hidden), dtype=jnp.float32) * 0.1
    b2 = jax.random.normal(kb2, (d_out,), dtype=jnp.float32) * 0.1
    # TODO(synk): orthogonal_init and the mlp_mha==6 torch.no_grad wrapper are
    # init/autograd-time only; forward math is identical, so not replicated.

    ref = _reference_forward(q, w1, b1, w2, b2)

    # --- f32 path (module-faithful numerics) ---
    M, aux = mlp_embedding_extractor_forward(q, w1, b1, w2, b2)
    M = jax.block_until_ready(M)
    assert aux is None and M.shape == (B, S, d_out)
    assert jnp.allclose(M, ref, atol=2e-3, rtol=2e-3), "f32 path mismatch vs reference"

    # --- bf16 streaming path (perf mode: bf16 operands, f32 accumulation) ---
    params_bf16 = prepare_mlp_embedding_params(w1, b1, w2, b2, compute_dtype=jnp.bfloat16)
    M_bf, _ = mlp_embedding_extractor_apply(q.astype(jnp.bfloat16), params_bf16)
    M_bf = jax.block_until_ready(M_bf)
    assert M_bf.dtype == jnp.bfloat16
    assert jnp.allclose(M_bf.astype(jnp.float32), ref, atol=5e-2, rtol=5e-2), \
        "bf16 path mismatch vs reference"

    # --- ragged row-count path (R not a multiple of the fold or the tile) ---
    B2, S2 = 3, 7
    q2 = jax.random.normal(kq, (B2, S2, d_model), dtype=jnp.float32)
    M2, _ = mlp_embedding_extractor_forward(q2, w1, b1, w2, b2)
    M2 = jax.block_until_ready(M2)
    ref2 = _reference_forward(q2, w1, b1, w2, b2)
    assert jnp.allclose(M2, ref2, atol=2e-3, rtol=2e-3), "ragged path mismatch vs reference"

    print("KERNEL_OK")
</pallas_src>

<mosaic_0001>
module attributes {stable_mosaic.version = 11 : i64} {
  func.func @_fused_mlp_kernel(%arg0: i32, %arg1: memref<8x128xf32, #tpu.memory_space<vmem>>, %arg2: memref<128x128xf32, #tpu.memory_space<vmem>>, %arg3: memref<1x128xf32, #tpu.memory_space<vmem>>, %arg4: memref<8x128xf32, #tpu.memory_space<vmem>>) attributes {dimension_semantics = [#tpu.dimension_semantics<parallel>], iteration_bounds = array<i64: 1>, scalar_prefetch = 0 : i64, scratch_operands = 0 : i64, tpu.core_type = #tpu.core_type<tc>, window_params = [{transform_indices = @transform_0, window_bounds = array<i64: 8, 128>}, {pipeline_mode = #tpu.pipeline_mode<synchronous>, transform_indices = @transform_1, window_bounds = array<i64: 128, 128>}, {pipeline_mode = #tpu.pipeline_mode<synchronous>, transform_indices = @transform_2, window_bounds = array<i64: 1, 128>}, {transform_indices = @transform_3, window_bounds = array<i64: 8, 128>}]} {
    %c0 = arith.constant 0 : index
    %c0_0 = arith.constant 0 : index
    %0 = vector.load %arg1[%c0, %c0_0] : memref<8x128xf32, #tpu.memory_space<vmem>>, vector<8x128xf32>
    %c0_1 = arith.constant 0 : index
    %c0_2 = arith.constant 0 : index
    %1 = vector.load %arg2[%c0_1, %c0_2] : memref<128x128xf32, #tpu.memory_space<vmem>>, vector<128x128xf32>
    %cst = arith.constant dense<0.000000e+00> : vector<8x128xf32>
    %2 = tpu.matmul %0, %1, %cst {dimension_numbers = #tpu.dot_dimension_numbers<[1], [0], [0], [1], [0, 0, 1, 1], [], []>} : vector<8x128xf32>, vector<128x128xf32>, vector<8x128xf32> -> vector<8x128xf32>
    %c0_3 = arith.constant 0 : index
    %c0_4 = arith.constant 0 : index
    %3 = vector.load %arg3[%c0_3, %c0_4] : memref<1x128xf32, #tpu.memory_space<vmem>>, vector<1x128xf32>
    %4 = vector.broadcast %3 : vector<1x128xf32> to vector<8x128xf32>
    %5 = arith.addf %2, %4 : vector<8x128xf32>
    %c0_5 = arith.constant 0 : index
    %c0_6 = arith.constant 0 : index
    %6 = vector.load %arg4[%c0_5, %c0_6] : memref<8x128xf32, #tpu.memory_space<vmem>>, vector<8x128xf32>
    tpu.vector_store %arg4[%c0_5, %c0_6], %5 {strides = array<i32>} : memref<8x128xf32, #tpu.memory_space<vmem>>, vector<8x128xf32>,
    return
  }
  func.func @transform_0(%arg0: i32) -> (i32, i32) {
    %c0_i32 = arith.constant 0 : i32
    %c0_i32_0 = arith.constant 0 : i32
    return %arg0, %c0_i32 : i32, i32
  }
  func.func @transform_1(%arg0: i32) -> (i32, i32) {
    %c0_i32 = arith.constant 0 : i32
    %c0_i32_0 = arith.constant 0 : i32
    %c0_i32_1 = arith.constant 0 : i32
    return %c0_i32, %c0_i32_0 : i32, i32
  }
  func.func @transform_2(%arg0: i32) -> (i32, i32) {
    %c0_i32 = arith.constant 0 : i32
    %c0_i32_0 = arith.constant 0 : i32
    %c0_i32_1 = arith.constant 0 : i32
    return %c0_i32, %c0_i32_0 : i32, i32
  }
  func.func @transform_3(%arg0: i32) -> (i32, i32) {
    %c0_i32 = arith.constant 0 : i32
    %c0_i32_0 = arith.constant 0 : i32
    return %arg0, %c0_i32 : i32, i32
  }
}

</mosaic_0001>

<llo_original>
// kernel: tpu_custom_call.1
$region0: #{tpu_custom_call.1}
  #allocation0 [shape = 'u32[]', space=smem, size = 0x4, offset = 0x4, fixed_abs, tag = 'smem constant byte address 0x4 - core index']
  #allocation1 [shape = 'u32[144,128]{1,0:T(1,128)}', space=vmem, size = 0x12000, scoped, tag = 'internal scratch']
  %s0 = inlined_call_operand.hbm [shape: f32[4,128], index: 0, kind: input, shape index: {}]
  %s1 = inlined_call_operand.hbm [shape: f32[128,128], index: 1, kind: input, shape index: {}]
  %s2 = inlined_call_operand.vmem [shape: f32[1,128], index: 2, kind: input, shape index: {}]
  %s3 = inlined_call_operand.hbm [shape: f32[4,128], index: 3, kind: output, shape index: {}]
  %s4 = sld [smem:[#allocation0]]
  $region30: #{tpu_custom_call.1} parent=0
    _
  %s6 = ssub.s32 1, %s4
  %s7 = scalar_select 0, %s6, %s4
  $region1: #{tpu_custom_call.1} parent=0
    #allocation2 [shape = 'u8[4096]{0}', space=vmem, size = 0x1000, scoped, tag = 'input window, operand 0, single buffered']
    #allocation3 [shape = 's32[1]{0}', space=sflag, size = 0x4, scoped, tag = 'scoped memory for tpu_custom_call.1']
    #allocation4 [shape = 's32[1]{0}', space=sflag, size = 0x4, scoped, tag = 'scoped memory for tpu_custom_call.1']
    #allocation5 [shape = 'u8[65536]{0}', space=vmem, size = 0x10000, scoped, tag = 'input window, operand 1, single buffered']
    #allocation6 [shape = 's32[1]{0}', space=sflag, size = 0x4, scoped, tag = 'scoped memory for tpu_custom_call.1']
    #allocation7 [shape = 'u8[4096]{0}', space=vmem, size = 0x1000, scoped, tag = 'output window, operand 0, single buffered']
    %8 = vsyncpa [#allocation3], 0
    %9 = vsyncpa [#allocation6], 0
    %10 = vsyncpa [#allocation4], 0
    // Predicated region
    $region2: #{tpu_custom_call.1} parent=1 // pred_check
      _
    $region3: #{tpu_custom_call.1} parent=1 // pred_check_branch
      %12 = sbr.rel (0) target = $region5
    $region4: #{tpu_custom_call.1} parent=1 // pred_region
      %s14 = ssub.s32 128, 64
      %15 = vsyncadd [#allocation3], %s14
      %s16 = sshll.u32 [#allocation2], 4
      %s17 = int_to_ptr.vmem [resolvable:$true] %s16
      %22 = dma.hbm_to_vmem [thread:$0]  %s0, 64, %s17, [#allocation3], 64, 64, 4
    $region5: #{tpu_custom_call.1} parent=1 // pred_fallthru
      _
    // Predicated region
    $region6: #{tpu_custom_call.1} parent=1 // pred_check
      _
    $region7: #{tpu_custom_call.1} parent=1 // pred_check_branch
      %24 = sbr.rel (0) target = $region9
    $region8: #{tpu_custom_call.1} parent=1 // pred_region
      %s26 = ssub.s32 2048, 2048
      %27 = vsyncadd [#allocation6], %s26
      %s28 = sshll.u32 [#allocation5], 4
      %s29 = int_to_ptr.vmem [resolvable:$true] %s28
      %34 = dma.hbm_to_vmem [thread:$0]  %s1, 2048, %s29, [#allocation6], 128, 128, 8
    $region9: #{tpu_custom_call.1} parent=1 // pred_fallthru
      _
    // Predicated region
    $region10: #{tpu_custom_call.1} parent=1 // pred_check
      _
    $region11: #{tpu_custom_call.1} parent=1 // pred_check_branch
      %36 = sbr.rel (0) target = $region13
    $region12: #{tpu_custom_call.1} parent=1 // pred_region
      _
    $region13: #{tpu_custom_call.1} parent=1 // pred_fallthru
      _
    // Predicated region
    $region14: #{tpu_custom_call.1} parent=1 // pred_check
      _
    $region15: #{tpu_custom_call.1} parent=1 // pred_check_branch
      %38 = sbr.rel (0) target = $region17
    $region16: #{tpu_custom_call.1} parent=1 // pred_region
      %39 = dma.done [#allocation3], 128
    $region17: #{tpu_custom_call.1} parent=1 // pred_fallthru
      _
    // Predicated region
    $region18: #{tpu_custom_call.1} parent=1 // pred_check
      _
    $region19: #{tpu_custom_call.1} parent=1 // pred_check_branch
      %41 = sbr.rel (0) target = $region21
    $region20: #{tpu_custom_call.1} parent=1 // pred_region
      %42 = dma.done [#allocation6], 2048
    $region21: #{tpu_custom_call.1} parent=1 // pred_fallthru
      _
    %v43 = vld [vmem:[#allocation2] sm:$0xff]
    %v44 = vld [vmem:[#allocation5] sm:$0xff]
    %v45 = vld [vmem:[#allocation5 + $0x8] sm:$0xff]
    %v46 = vld [vmem:[#allocation5 + $0x10] sm:$0xff]
    %v47 = vld [vmem:[#allocation5 + $0x18] sm:$0xff]
    %v48 = vld [vmem:[#allocation5 + $0x20] sm:$0xff]
    %v49 = vld [vmem:[#allocation5 + $0x28] sm:$0xff]
    %v50 = vld [vmem:[#allocation5 + $0x30] sm:$0xff]
    %v51 = vld [vmem:[#allocation5 + $0x38] sm:$0xff]
    %v52 = vld [vmem:[#allocation5 + $0x40] sm:$0xff]
    %v53 = vld [vmem:[#allocation5 + $0x48] sm:$0xff]
    %v54 = vld [vmem:[#allocation5 + $0x50] sm:$0xff]
    %v55 = vld [vmem:[#allocation5 + $0x58] sm:$0xff]
    %v56 = vld [vmem:[#allocation5 + $0x60] sm:$0xff]
    %v57 = vld [vmem:[#allocation5 + $0x68] sm:$0xff]
    %v58 = vld [vmem:[#allocation5 + $0x70] sm:$0xff]
    %v59 = vld [vmem:[#allocation5 + $0x78] sm:$0xff]
    %v60 = vld [vmem:[%s2] sm:$0x1]
    %v62 = vlaneseq
    %v63 = vshrl.u32 %v62, 7
    %v64 = vsub.s32 0, %v63
    %v65 = vrot.slane %v60, %v64
    %67 = vmatprep.subr.mxu0 0.0
    %68 = vmatpush1.msra.mxu0 %v44
    %69 = vmatprep.subr.mxu0 0.0
    %70 = vmatpush1.msra.mxu0 %v45
    %71 = vmatprep.subr.mxu0 0.0
    %72 = vmatpush1.msra.mxu0 %v46
    %73 = vmatprep.subr.mxu0 0.0
    %74 = vmatpush1.msra.mxu0 %v47
    %75 = vmatprep.subr.mxu0 0.0
    %76 = vmatpush1.msra.mxu0 %v48
    %77 = vmatprep.subr.mxu0 0.0
    %78 = vmatpush1.msra.mxu0 %v49
    %79 = vmatprep.subr.mxu0 0.0
    %80 = vmatpush1.msra.mxu0 %v50
    %81 = vmatprep.subr.mxu0 0.0
    %82 = vmatpush1.msra.mxu0 %v51
    %83 = vmatprep.subr.mxu0 0.0
    %84 = vmatpush1.msra.mxu0 %v52
    %85 = vmatprep.subr.mxu0 0.0
    %86 = vmatpush1.msra.mxu0 %v53
    %87 = vmatprep.subr.mxu0 0.0
    %88 = vmatpush1.msra.mxu0 %v54
    %89 = vmatprep.subr.mxu0 0.0
    %90 = vmatpush1.msra.mxu0 %v55
    %91 = vmatprep.subr.mxu0 0.0
    %92 = vmatpush1.msra.mxu0 %v56
    %93 = vmatprep.subr.mxu0 0.0
    %94 = vmatpush1.msra.mxu0 %v57
    %95 = vmatprep.subr.mxu0 0.0
    %96 = vmatpush1.msra.mxu0 %v58
    %97 = vmatprep.subr.mxu0 0.0
    %98 = vmatpush1.msra.mxu0 %v59
    %99 = vmatprep.subr.mxu0 0.0
    %100 = vmatpush1.msra.mxu0 0.0
    %101 = vmatprep.subr.mxu0 0.0
    %102 = vmatpush1.msra.mxu0 0.0
    %103 = vmatprep.subr.mxu0 0.0
    %104 = vmatpush1.msra.mxu0 0.0
    %105 = vmatprep.subr.mxu0 0.0
    %106 = vmatpush1.msra.mxu0 0.0
    %107 = vmatprep.subr.mxu0 0.0
    %108 = vmatpush1.msra.mxu0 0.0
    %109 = vmatprep.subr.mxu0 0.0
    %110 = vmatpush1.msra.mxu0 0.0
    %111 = vmatprep.subr.mxu0 0.0
    %112 = vmatpush1.msra.mxu0 0.0
    %113 = vmatprep.subr.mxu0 0.0
    %114 = vmatpush1.msra.mxu0 0.0
    %115 = vmatprep.subr.mxu0 0.0
    %116 = vmatpush1.msra.mxu0 0.0
    %117 = vmatprep.subr.mxu0 0.0
    %118 = vmatpush1.msra.mxu0 0.0
    %119 = vmatprep.subr.mxu0 0.0
    %120 = vmatpush1.msra.mxu0 0.0
    %121 = vmatprep.subr.mxu0 0.0
    %122 = vmatpush1.msra.mxu0 0.0
    %123 = vmatprep.subr.mxu0 0.0
    %124 = vmatpush1.msra.mxu0 0.0
    %125 = vmatprep.subr.mxu0 0.0
    %126 = vmatpush1.msra.mxu0 0.0
    %127 = vmatprep.subr.mxu0 0.0
    %128 = vmatpush1.msra.mxu0 0.0
    %129 = vmatprep.subr.mxu0 0.0
    %130 = vmatpush1.msra.mxu0 0.0
    %131 = vmatprep.mubr.f32.mxu0 0.0
    %132 = vmatmul.mubr.f32.gmra.mrb[0].mxu0 %v43
    %v133 = vpop.f32.mrb[0].mxu0
    %v134 = vadd.f32 %v65, %v133
    %v135 = vpop.f32.mrb[0].mxu0
    %136 = vdwg.mxu0
    %137 = vst [vmem:[#allocation7] sm:$0xff] %v134
    // Predicated region
    $region22: #{tpu_custom_call.1} parent=1 // pred_check
      _
    $region23: #{tpu_custom_call.1} parent=1 // pred_check_branch
      %139 = sbr.rel (0) target = $region25
    $region24: #{tpu_custom_call.1} parent=1 // pred_region
      %s141 = ssub.s32 128, 64
      %142 = vsyncadd [#allocation4], %s141
      %s143 = sshll.u32 [#allocation7], 4
      %s144 = int_to_ptr.vmem [resolvable:$true] %s143
      %149 = dma.vmem_to_hbm [thread:$0]  %s144, 64, %s3, [#allocation4], 64, 64, 4
    $region25: #{tpu_custom_call.1} parent=1 // pred_fallthru
      _
    // Predicated region
    $region26: #{tpu_custom_call.1} parent=1 // pred_check
      _
    $region27: #{tpu_custom_call.1} parent=1 // pred_check_branch
      %151 = sbr.rel (0) target = $region29
    $region28: #{tpu_custom_call.1} parent=1 // pred_region
      %152 = dma.done [#allocation4], 128
    $region29: #{tpu_custom_call.1} parent=1 // pred_fallthru
      _
    %153 = vsyncpa [#allocation3], 1
    %154 = vsyncpa [#allocation6], 1
    %155 = vsyncpa [#allocation4], 1

</llo_original>
